<compile_context>
chip_gen: v5e
topology: v5e:2x2
jax: 0.10.0
libtpu: 0.0.40
codegen_flags: <defaults>
</compile_context>

<pallas_src>
import jax
import jax.numpy as jnp
from jax.experimental import pallas as pl
from jax.experimental.pallas import tpu as pltpu

_LANE = 128


def sinlu_kernel(a_ref, b_ref, x_ref, o_ref):
    # a_ref / b_ref: (1,) f32 scalars in SMEM; x_ref / o_ref: (block_rows, 128) VMEM tiles.
    a = a_ref[0]
    b = b_ref[0]
    x = x_ref[...].astype(jnp.float32)
    # sigmoid(x) == 0.5 * tanh(0.5 * x) + 0.5  -> tanh runs on the EUP slot,
    # no VALU divide chain.
    sig = 0.5 * jnp.tanh(0.5 * x) + 0.5
    res = sig * (x + a * jnp.sin(b * x))
    o_ref[...] = res.astype(o_ref.dtype)


def _sinlu_jax(x, a, b):
    """Plain-JAX SinLU for the sub-128-element tail (f32 internal math)."""
    xf = x.astype(jnp.float32)
    res = (0.5 * jnp.tanh(0.5 * xf) + 0.5) * (xf + a[0] * jnp.sin(b[0] * xf))
    return res.astype(x.dtype)


def _sinlu_pallas(x2, a, b, block_bytes):
    """x2: (rows, 128) lane-dense slab."""
    rows = x2.shape[0]
    itemsize = jnp.dtype(x2.dtype).itemsize
    # Minimum sublane tile per dtype: f32 -> 8, bf16 -> 16, int8/fp8 -> 32.
    min_sublane = max(8, 32 // itemsize)

    total_bytes = rows * _LANE * itemsize
    target_rows = max(min_sublane, block_bytes // (_LANE * itemsize))
    target_rows = max(min_sublane, (target_rows // min_sublane) * min_sublane)

    if total_bytes <= 256 * 1024:
        # Tiny input: a single block (full array dims are always a legal block
        # shape); pipelining gains nothing here.
        block_rows = rows
    else:
        # At least ~4 pipeline steps so DMA-in / compute / DMA-out overlap,
        # capped at ~block_bytes per block.  Partial last block is masked by
        # Pallas, so rounding to min_sublane is always legal.
        block_rows = min(target_rows, pl.cdiv(rows, 4))
        block_rows = max(min_sublane, pl.cdiv(block_rows, min_sublane) * min_sublane)

    grid = (pl.cdiv(rows, block_rows),)

    return pl.pallas_call(
        sinlu_kernel,
        out_shape=jax.ShapeDtypeStruct(x2.shape, x2.dtype),
        grid=grid,
        in_specs=[
            pl.BlockSpec(memory_space=pltpu.MemorySpace.SMEM),   # a (1,)
            pl.BlockSpec(memory_space=pltpu.MemorySpace.SMEM),   # b (1,)
            pl.BlockSpec((block_rows, _LANE), lambda i: (i, 0)),
        ],
        out_specs=pl.BlockSpec((block_rows, _LANE), lambda i: (i, 0)),
        compiler_params=pltpu.CompilerParams(
            dimension_semantics=("parallel",)),
    )(a, b, x2)


def sinlu(x, a, b, *, block_bytes=2 * 1024 * 1024):
    """Elementwise SinLU over an array of any shape (NCHW in the PyTorch module)."""
    orig_shape = x.shape
    a32 = jnp.asarray(a).reshape(-1)[:1].astype(jnp.float32)
    b32 = jnp.asarray(b).reshape(-1)[:1].astype(jnp.float32)

    flat = x.reshape(-1)
    n = flat.shape[0]
    n_main = (n // _LANE) * _LANE

    if n_main == 0:
        # Fewer than 128 elements: not worth a kernel launch.
        return _sinlu_jax(flat, a32, b32).reshape(orig_shape)

    main = _sinlu_pallas(flat[:n_main].reshape(-1, _LANE), a32, b32, block_bytes)

    if n_main == n:
        return main.reshape(orig_shape)

    # <128-element remainder: tiny plain-JAX tail (avoids a pad+slice pass
    # over the whole tensor).
    tail = _sinlu_jax(flat[n_main:], a32, b32)
    return jnp.concatenate([main.reshape(-1), tail]).reshape(orig_shape)


if __name__ == "__main__":
    key = jax.random.PRNGKey(0)
    x = jax.random.normal(key, (2, 4, 16, 16), dtype=jnp.float32)  # NCHW

    # Parameters: nn.init.constant_(a, 1.0), nn.init.constant_(b, 1.0)
    a = jnp.ones((1,), dtype=jnp.float32)
    b = jnp.ones((1,), dtype=jnp.float32)

    out = jax.block_until_ready(sinlu(x, a, b))

    # Reference check in plain JAX (f32).
    ref = jax.nn.sigmoid(x) * (x + a[0] * jnp.sin(b[0] * x))
    assert out.shape == x.shape and out.dtype == x.dtype
    assert jnp.allclose(out, ref, atol=1e-5, rtol=1e-5)

    # Also exercise the unaligned-tail path (n % 128 != 0).
    x2 = jax.random.normal(jax.random.PRNGKey(1), (2, 3, 100), dtype=jnp.float32)
    out2 = jax.block_until_ready(sinlu(x2, a, b))
    ref2 = jax.nn.sigmoid(x2) * (x2 + a[0] * jnp.sin(b[0] * x2))
    assert out2.shape == x2.shape and out2.dtype == x2.dtype
    assert jnp.allclose(out2, ref2, atol=1e-5, rtol=1e-5)

    print("KERNEL_OK")
</pallas_src>

<mosaic_0001>
module attributes {stable_mosaic.version = 11 : i64} {
  func.func @sinlu_kernel(%arg0: i32, %arg1: memref<1xf32, #tpu.memory_space<smem>>, %arg2: memref<1xf32, #tpu.memory_space<smem>>, %arg3: memref<16x128xf32, #tpu.memory_space<vmem>>, %arg4: memref<16x128xf32, #tpu.memory_space<vmem>>) attributes {dimension_semantics = [#tpu.dimension_semantics<parallel>], iteration_bounds = array<i64: 1>, scalar_prefetch = 0 : i64, scratch_operands = 0 : i64, tpu.core_type = #tpu.core_type<tc>, window_params = [{transform_indices = @transform_0, window_bounds = array<i64: 1>}, {transform_indices = @transform_1, window_bounds = array<i64: 1>}, {transform_indices = @transform_2, window_bounds = array<i64: 16, 128>}, {transform_indices = @transform_3, window_bounds = array<i64: 16, 128>}]} {
    %c0 = arith.constant 0 : index
    %0 = memref.load %arg1[%c0] : memref<1xf32, #tpu.memory_space<smem>>
    %c0_0 = arith.constant 0 : index
    %1 = memref.load %arg2[%c0_0] : memref<1xf32, #tpu.memory_space<smem>>
    %c0_1 = arith.constant 0 : index
    %c0_2 = arith.constant 0 : index
    %2 = vector.load %arg3[%c0_1, %c0_2] : memref<16x128xf32, #tpu.memory_space<vmem>>, vector<16x128xf32>
    %cst = arith.constant 5.000000e-01 : f32
    %3 = vector.broadcast %cst : f32 to vector<16x128xf32>
    %4 = arith.mulf %3, %2 : vector<16x128xf32>
    %5 = math.tanh %4 : vector<16x128xf32>
    %cst_3 = arith.constant 5.000000e-01 : f32
    %6 = vector.broadcast %cst_3 : f32 to vector<16x128xf32>
    %7 = arith.mulf %6, %5 : vector<16x128xf32>
    %cst_4 = arith.constant 5.000000e-01 : f32
    %8 = vector.broadcast %cst_4 : f32 to vector<16x128xf32>
    %9 = arith.addf %7, %8 : vector<16x128xf32>
    %10 = vector.broadcast %1 : f32 to vector<16x128xf32>
    %11 = arith.mulf %10, %2 : vector<16x128xf32>
    %12 = math.sin %11 : vector<16x128xf32>
    %13 = vector.broadcast %0 : f32 to vector<16x128xf32>
    %14 = arith.mulf %13, %12 : vector<16x128xf32>
    %15 = arith.addf %2, %14 : vector<16x128xf32>
    %16 = arith.mulf %9, %15 : vector<16x128xf32>
    %c0_5 = arith.constant 0 : index
    %c0_6 = arith.constant 0 : index
    %17 = vector.load %arg4[%c0_5, %c0_6] : memref<16x128xf32, #tpu.memory_space<vmem>>, vector<16x128xf32>
    tpu.vector_store %arg4[%c0_5, %c0_6], %16 {strides = array<i32>} : memref<16x128xf32, #tpu.memory_space<vmem>>, vector<16x128xf32>,
    return
  }
  func.func @transform_0(%arg0: i32) -> i32 {
    %c0_i32 = arith.constant 0 : i32
    %c0_i32_0 = arith.constant 0 : i32
    return %c0_i32 : i32
  }
  func.func @transform_1(%arg0: i32) -> i32 {
    %c0_i32 = arith.constant 0 : i32
    %c0_i32_0 = arith.constant 0 : i32
    return %c0_i32 : i32
  }
  func.func @transform_2(%arg0: i32) -> (i32, i32) {
    %c0_i32 = arith.constant 0 : i32
    %c0_i32_0 = arith.constant 0 : i32
    return %arg0, %c0_i32 : i32, i32
  }
  func.func @transform_3(%arg0: i32) -> (i32, i32) {
    %c0_i32 = arith.constant 0 : i32
    %c0_i32_0 = arith.constant 0 : i32
    return %arg0, %c0_i32 : i32, i32
  }
}

</mosaic_0001>

<llo_original>
// kernel: tpu_custom_call.1
$region0: #{tpu_custom_call.1}
  #allocation0 [shape = 'u32[]', space=smem, size = 0x4, offset = 0x4, fixed_abs, tag = 'smem constant byte address 0x4 - core index']
  #allocation1 [shape = 'u32[72,128]{1,0:T(1,128)}', space=vmem, size = 0x9000, scoped, tag = 'internal scratch']
  #allocation2 [shape = 'f32[1]{0:T(128)S(6)}', space=smem, size = 0x200, scoped, tag = 'scoped memory for tpu_custom_call.1']
  #allocation3 [shape = 'f32[1]{0:T(128)S(6)}', space=smem, size = 0x200, scoped, tag = 'scoped memory for tpu_custom_call.1']
  %s0 = inlined_call_operand.<no memory space> [shape: f32[1], index: 0, kind: input, shape index: {}]
  %s1 = inlined_call_operand.<no memory space> [shape: f32[1], index: 1, kind: input, shape index: {}]
  %s2 = inlined_call_operand.hbm [shape: f32[16,128], index: 2, kind: input, shape index: {}]
  %s3 = inlined_call_operand.hbm [shape: f32[16,128], index: 3, kind: output, shape index: {}]
  %s4 = sld [smem:[#allocation0]]
  $region26: #{tpu_custom_call.1} parent=0
    _
  %s6 = ssub.s32 1, %s4
  %s7 = scalar_select 0, %s6, %s4
  %8 = sst [smem:[#allocation2]] %s0
  %9 = sst [smem:[#allocation3]] %s1
  $region1: #{tpu_custom_call.1} parent=0
    #allocation4 [shape = 'u8[8192]{0}', space=vmem, size = 0x2000, scoped, tag = 'input window, operand 2, single buffered']
    #allocation5 [shape = 's32[1]{0}', space=sflag, size = 0x4, scoped, tag = 'scoped memory for tpu_custom_call.1']
    #allocation6 [shape = 's32[1]{0}', space=sflag, size = 0x4, scoped, tag = 'scoped memory for tpu_custom_call.1']
    #allocation7 [shape = 'u8[8192]{0}', space=vmem, size = 0x2000, scoped, tag = 'output window, operand 0, single buffered']
    %10 = vsyncpa [#allocation5], 0
    %11 = vsyncpa [#allocation6], 0
    // Predicated region
    $region2: #{tpu_custom_call.1} parent=1 // pred_check
      _
    $region3: #{tpu_custom_call.1} parent=1 // pred_check_branch
      %13 = sbr.rel (0) target = $region5
    $region4: #{tpu_custom_call.1} parent=1 // pred_region
      _
    $region5: #{tpu_custom_call.1} parent=1 // pred_fallthru
      _
    // Predicated region
    $region6: #{tpu_custom_call.1} parent=1 // pred_check
      _
    $region7: #{tpu_custom_call.1} parent=1 // pred_check_branch
      %15 = sbr.rel (0) target = $region9
    $region8: #{tpu_custom_call.1} parent=1 // pred_region
      _
    $region9: #{tpu_custom_call.1} parent=1 // pred_fallthru
      _
    // Predicated region
    $region10: #{tpu_custom_call.1} parent=1 // pred_check
      _
    $region11: #{tpu_custom_call.1} parent=1 // pred_check_branch
      %17 = sbr.rel (0) target = $region13
    $region12: #{tpu_custom_call.1} parent=1 // pred_region
      %19 = vsyncadd [#allocation5], 0
      %s20 = sshll.u32 %s2, 4
      %s21 = int_to_ptr.hbm [resolvable:$true] %s20
      %s22 = sshll.u32 [#allocation4], 4
      %s23 = int_to_ptr.vmem [resolvable:$true] %s22
      %28 = dma.hbm_to_vmem [thread:$0]  %s21, 256, %s23, [#allocation5], 128, 128, 8
    $region13: #{tpu_custom_call.1} parent=1 // pred_fallthru
      _
    // Predicated region
    $region14: #{tpu_custom_call.1} parent=1 // pred_check
      _
    $region15: #{tpu_custom_call.1} parent=1 // pred_check_branch
      %30 = sbr.rel (0) target = $region17
    $region16: #{tpu_custom_call.1} parent=1 // pred_region
      %32 = dma.done [#allocation5], 256
    $region17: #{tpu_custom_call.1} parent=1 // pred_fallthru
      _
    %s33 = sld [smem:[#allocation2]]
    %s34 = sld [smem:[#allocation3]]
    %v35 = vld [vmem:[#allocation4] sm:$0xff]
    %v36 = vld [vmem:[#allocation4 + $0x8] sm:$0xff]
    %v37 = vmul.f32 %v35, 0.5
    %v38 = vmul.f32 %v36, 0.5
    %v39 = vtanh.pop %v37
    %v40 = vtanh.pop %v38
    %v41 = vmul.f32 %v39, 0.5
    %v42 = vmul.f32 %v40, 0.5
    %v43 = vadd.f32 %v41, 0.5
    %v44 = vadd.f32 %v42, 0.5
    %v45 = vstv %s34
    %v46 = vmul.f32 %v45, %v35
    %v47 = vmul.f32 %v45, %v36
    %v48 = vand.u32 2147483647, %v46
    %vm49 = vcmp.le.f32.partialorder %v48, 0.7853982
    %vm50 = vcmp.lt.s32.totalorder %v46, 0
    %v51 = vand.u32 %v46, 2139095040
    %v52 = vshrl.u32 %v51, 23
    %v53 = vsub.s32 %v52, 127
    %v54 = vand.u32 2147483647, %v46
    %v55 = vand.u32 %v54, 8388607
    %v56 = vor.u32 %v55, 8388608
    %v57 = vsub.s32 0, %v56
    %v58 = vadd.s32 %v53, 1
    %vm59 = vcmp.gt.s32.totalorder %v58, 0
    %v60 = vsel %vm59, %v58, 0
    %v61 = vshrl.u32 %v60, 5
    %v62 = vand.u32 %v60, 31
    %v63 = vsub.s32 32, %v62
    %v64 = vshrl.u32 683565275, %v63
    %v65 = vshll.u32 683565275, %v62
    %v66 = vshrl.u32 2475754826, %v63
    %v67 = vor.u32 %v65, %v66
    %v68 = vshll.u32 2475754826, %v62
    %v69 = vshrl.u32 2131351028, %v63
    %v70 = vor.u32 %v68, %v69
    %v71 = vshll.u32 2131351028, %v62
    %v72 = vshrl.u32 2102212464, %v63
    %v73 = vor.u32 %v71, %v72
    %v74 = vshll.u32 2102212464, %v62
    %v75 = vshrl.u32 920167782, %v63
    %v76 = vor.u32 %v74, %v75
    %v77 = vshll.u32 920167782, %v62
    %v78 = vshrl.u32 1326507024, %v63
    %v79 = vor.u32 %v77, %v78
    %vm80 = vcmp.lt.s32.totalorder %v61, 1
    %vm81 = vcmp.lt.s32.totalorder %v61, 2
    %vm82 = vcmp.lt.s32.totalorder %v61, 3
    %vm83 = vcmp.lt.s32.totalorder %v61, 4
    %v84 = vsel %vm80, %v64, %v67
    %v85 = vsel %vm83, %v73, 2102212464
    %v86 = vsel %vm82, %v70, %v85
    %v87 = vsel %vm81, %v84, %v86
    %v88 = vsel %vm80, %v67, %v70
    %v89 = vsel %vm83, %v76, 920167782
    %v90 = vsel %vm82, %v73, %v89
    %v91 = vsel %vm81, %v88, %v90
    %v92 = vsel %vm80, %v70, %v73
    %v93 = vsel %vm83, %v79, 1326507024
    %v94 = vsel %vm82, %v76, %v93
    %v95 = vsel %vm81, %v92, %v94
    %v96 = vshll.u32 %v56, 8
    %v97 = vand.u32 %v96, 65535
    %v98 = vshrl.u32 %v96, 16
    %v99 = vand.u32 %v95, 65535
    %v100 = vshrl.u32 %v95, 16
    %v101 = vmul.u32 %v97, %v99
    %v102 = vmul.u32 %v97, %v100
    %v103 = vmul.u32 %v98, %v99
    %v104 = vmul.u32 %v98, %v100
    %v105 = vshll.u32 %v102, 16
    %v106 = vshrl.u32 %v102, 16
    %v107 = vshll.u32 %v103, 16
    %v108 = vshrl.u32 %v103, 16
    %vm109 = vc.u32 %v101, %v105
    %v110 = vsel %vm109, 1, 0
    %v111 = vadd.s32 %v101, %v105
    %v112 = vadd.s32 %v104, %v110
    %vm113 = vc.u32 %v111, %v107
    %v114 = vsel %vm113, 1, 0
    %v115 = vadd.s32 %v111, %v107
    %v116 = vadd.s32 %v112, %v114
    %v117 = vadd.s32 %v116, %v106
    %v118 = vadd.s32 %v117, %v108
    %v119 = vand.u32 %v96, 65535
    %v120 = vshrl.u32 %v96, 16
    %v121 = vand.u32 %v91, 65535
    %v122 = vshrl.u32 %v91, 16
    %v123 = vmul.u32 %v119, %v121
    %v124 = vmul.u32 %v119, %v122
    %v125 = vmul.u32 %v120, %v121
    %v126 = vmul.u32 %v120, %v122
    %v127 = vshll.u32 %v124, 16
    %v128 = vshrl.u32 %v124, 16
    %v129 = vshll.u32 %v125, 16
    %v130 = vshrl.u32 %v125, 16
    %vm131 = vc.u32 %v123, %v127
    %v132 = vsel %vm131, 1, 0
    %v133 = vadd.s32 %v123, %v127
    %v134 = vadd.s32 %v126, %v132
    %vm135 = vc.u32 %v133, %v129
    %v136 = vsel %vm135, 1, 0
    %v137 = vadd.s32 %v133, %v129
    %v138 = vadd.s32 %v134, %v136
    %v139 = vadd.s32 %v138, %v128
    %v140 = vadd.s32 %v139, %v130
    %v141 = vmul.u32 %v96, %v87
    %v142 = vadd.s32 %v118, %v137
    %vm143 = vc.u32 %v118, %v137
    %v144 = vadd.s32 %v140, 1
    %v145 = vsel %vm143, %v144, %v140
    %v146 = vadd.s32 %v141, %v145
    %v147 = vadd.s32 %v146, 536870912
    %v148 = vshrl.u32 %v147, 30
    %v149 = vshll.u32 %v148, 30
    %v150 = vsub.s32 %v146, %v149
    %vm151 = vcmp.lt.s32.totalorder %v150, 0
    %v152 = vsub.s32 0, %v150
    %v153 = vsel %vm151, %v152, %v150
    %v154 = vclz %v153
    %v155 = vsub.s32 %v154, 2
    %vm156 = vcmp.gt.s32.totalorder 0, %v155
    %v157 = vsel %vm156, 0, %v155
    %v158 = vsub.s32 32, %v157
    %v159 = vshll.u32 %v150, %v157
    %v160 = vshrl.u32 %v142, %v158
    %v161 = vor.u32 %v159, %v160
    %v162 = vsub.s32 4294967266, %v157
    %v163 = vadd.s32 %v162, 127
    %v164 = vshll.u32 %v163, 23
    %v165 = vor.u32 4788187, %v164
    %v166 = vand.u32 2147483647, %v165
    %v168 = vcvt.s32.f32 %v161
    %v169 = vmul.f32 %v168, %v166
    %v170 = vxor.u32 %v169, 2147483648
    %v171 = vsel %vm50, %v170, %v169
    %v172 = vsub.s32 4, %v148
    %v173 = vsel %vm50, %v172, %v148
    %v174 = vsel %vm49, %v46, %v171
    %v175 = vsel %vm49, 0, %v173
    %v176 = vmul.f32 %v174, %v174
    %v177 = vmul.f32 %v176, -0.001358992
    %v178 = vadd.f32 %v177, 0.041655596
    %v179 = vmul.f32 %v176, %v178
    %v180 = vadd.f32 %v179, -0.4999988
    %v181 = vmul.f32 %v176, %v180
    %v182 = vadd.f32 1.0, %v181
    %v183 = vmul.f32 %v174, %v174
    %v184 = vmul.f32 %v183, -0.00019511016
    %v185 = vadd.f32 %v184, 0.008332121
    %v186 = vmul.f32 %v183, %v185
    %v187 = vadd.f32 %v186, -0.16666654
    %v188 = vmul.f32 %v183, %v187
    %v189 = vadd.f32 %v188, 1.0
    %v190 = vmul.f32 %v189, %v174
    %vm191 = vweird.f32 %v46
    %v192 = vadd.s32 %v175, 3
    %v193 = vand.u32 %v192, 3
    %vm194 = vcmp.lt.s32.totalorder %v193, 2
    %vm195 = vcmp.eq.s32.totalorder %v193, 0
    %v196 = vxor.u32 %v190, 2147483648
    %v197 = vsel %vm195, %v182, %v196
    %vm198 = vcmp.eq.s32.totalorder %v193, 2
    %v199 = vxor.u32 %v182, 2147483648
    %v200 = vsel %vm198, %v199, %v190
    %v201 = vsel %vm194, %v197, %v200
    %v202 = vsel %vm191, nan, %v201
    %v203 = vand.u32 2147483647, %v47
    %vm204 = vcmp.le.f32.partialorder %v203, 0.7853982
    %vm205 = vcmp.lt.s32.totalorder %v47, 0
    %v206 = vand.u32 %v47, 2139095040
    %v207 = vshrl.u32 %v206, 23
    %v208 = vsub.s32 %v207, 127
    %v209 = vand.u32 2147483647, %v47
    %v210 = vand.u32 %v209, 8388607
    %v211 = vor.u32 %v210, 8388608
    %v212 = vsub.s32 0, %v211
    %v213 = vadd.s32 %v208, 1
    %vm214 = vcmp.gt.s32.totalorder %v213, 0
    %v215 = vsel %vm214, %v213, 0
    %v216 = vshrl.u32 %v215, 5
    %v217 = vand.u32 %v215, 31
    %v218 = vsub.s32 32, %v217
    %v219 = vshrl.u32 683565275, %v218
    %v220 = vshll.u32 683565275, %v217
    %v221 = vshrl.u32 2475754826, %v218
    %v222 = vor.u32 %v220, %v221
    %v223 = vshll.u32 2475754826, %v217
    %v224 = vshrl.u32 2131351028, %v218
    %v225 = vor.u32 %v223, %v224
    %v226 = vshll.u32 2131351028, %v217
    %v227 = vshrl.u32 2102212464, %v218
    %v228 = vor.u32 %v226, %v227
    %v229 = vshll.u32 2102212464, %v217
    %v230 = vshrl.u32 920167782, %v218
    %v231 = vor.u32 %v229, %v230
    %v232 = vshll.u32 920167782, %v217
    %v233 = vshrl.u32 1326507024, %v218
    %v234 = vor.u32 %v232, %v233
    %vm235 = vcmp.lt.s32.totalorder %v216, 1
    %vm236 = vcmp.lt.s32.totalorder %v216, 2
    %vm237 = vcmp.lt.s32.totalorder %v216, 3
    %vm238 = vcmp.lt.s32.totalorder %v216, 4
    %v239 = vsel %vm235, %v219, %v222
    %v240 = vsel %vm238, %v228, 2102212464
    %v241 = vsel %vm237, %v225, %v240
    %v242 = vsel %vm236, %v239, %v241
    %v243 = vsel %vm235, %v222, %v225
    %v244 = vsel %vm238, %v231, 920167782
    %v245 = vsel %vm237, %v228, %v244
    %v246 = vsel %vm236, %v243, %v245
    %v247 = vsel %vm235, %v225, %v228
    %v248 = vsel %vm238, %v234, 1326507024
    %v249 = vsel %vm237, %v231, %v248
    %v250 = vsel %vm236, %v247, %v249
    %v251 = vshll.u32 %v211, 8
    %v252 = vand.u32 %v251, 65535
    %v253 = vshrl.u32 %v251, 16
    %v254 = vand.u32 %v250, 65535
    %v255 = vshrl.u32 %v250, 16
    %v256 = vmul.u32 %v252, %v254
    %v257 = vmul.u32 %v252, %v255
    %v258 = vmul.u32 %v253, %v254
    %v259 = vmul.u32 %v253, %v255
    %v260 = vshll.u32 %v257, 16
    %v261 = vshrl.u32 %v257, 16
    %v262 = vshll.u32 %v258, 16
    %v263 = vshrl.u32 %v258, 16
    %vm264 = vc.u32 %v256, %v260
    %v265 = vsel %vm264, 1, 0
    %v266 = vadd.s32 %v256, %v260
    %v267 = vadd.s32 %v259, %v265
    %vm268 = vc.u32 %v266, %v262
    %v269 = vsel %vm268, 1, 0
    %v270 = vadd.s32 %v266, %v262
    %v271 = vadd.s32 %v267, %v269
    %v272 = vadd.s32 %v271, %v261
    %v273 = vadd.s32 %v272, %v263
    %v274 = vand.u32 %v251, 65535
    %v275 = vshrl.u32 %v251, 16
    %v276 = vand.u32 %v246, 65535
    %v277 = vshrl.u32 %v246, 16
    %v278 = vmul.u32 %v274, %v276
    %v279 = vmul.u32 %v274, %v277
    %v280 = vmul.u32 %v275, %v276
    %v281 = vmul.u32 %v275, %v277
    %v282 = vshll.u32 %v279, 16
    %v283 = vshrl.u32 %v279, 16
    %v284 = vshll.u32 %v280, 16
    %v285 = vshrl.u32 %v280, 16
    %vm286 = vc.u32 %v278, %v282
    %v287 = vsel %vm286, 1, 0
    %v288 = vadd.s32 %v278, %v282
    %v289 = vadd.s32 %v281, %v287
    %vm290 = vc.u32 %v288, %v284
    %v291 = vsel %vm290, 1, 0
    %v292 = vadd.s32 %v288, %v284
    %v293 = vadd.s32 %v289, %v291
    %v294 = vadd.s32 %v293, %v283
    %v295 = vadd.s32 %v294, %v285
    %v296 = vmul.u32 %v251, %v242
    %v297 = vadd.s32 %v273, %v292
    %vm298 = vc.u32 %v273, %v292
    %v299 = vadd.s32 %v295, 1
    %v300 = vsel %vm298, %v299, %v295
    %v301 = vadd.s32 %v296, %v300
    %v302 = vadd.s32 %v301, 536870912
    %v303 = vshrl.u32 %v302, 30
    %v304 = vshll.u32 %v303, 30
    %v305 = vsub.s32 %v301, %v304
    %vm306 = vcmp.lt.s32.totalorder %v305, 0
    %v307 = vsub.s32 0, %v305
    %v308 = vsel %vm306, %v307, %v305
    %v309 = vclz %v308
    %v310 = vsub.s32 %v309, 2
    %vm311 = vcmp.gt.s32.totalorder 0, %v310
    %v312 = vsel %vm311, 0, %v310
    %v313 = vsub.s32 32, %v312
    %v314 = vshll.u32 %v305, %v312
    %v315 = vshrl.u32 %v297, %v313
    %v316 = vor.u32 %v314, %v315
    %v317 = vsub.s32 4294967266, %v312
    %v318 = vadd.s32 %v317, 127
    %v319 = vshll.u32 %v318, 23
    %v320 = vor.u32 4788187, %v319
    %v321 = vand.u32 2147483647, %v320
    %v323 = vcvt.s32.f32 %v316
    %v324 = vmul.f32 %v323, %v321
    %v325 = vxor.u32 %v324, 2147483648
    %v326 = vsel %vm205, %v325, %v324
    %v327 = vsub.s32 4, %v303
    %v328 = vsel %vm205, %v327, %v303
    %v329 = vsel %vm204, %v47, %v326
    %v330 = vsel %vm204, 0, %v328
    %v331 = vmul.f32 %v329, %v329
    %v332 = vmul.f32 %v331, -0.001358992
    %v333 = vadd.f32 %v332, 0.041655596
    %v334 = vmul.f32 %v331, %v333
    %v335 = vadd.f32 %v334, -0.4999988
    %v336 = vmul.f32 %v331, %v335
    %v337 = vadd.f32 1.0, %v336
    %v338 = vmul.f32 %v329, %v329
    %v339 = vmul.f32 %v338, -0.00019511016
    %v340 = vadd.f32 %v339, 0.008332121
    %v341 = vmul.f32 %v338, %v340
    %v342 = vadd.f32 %v341, -0.16666654
    %v343 = vmul.f32 %v338, %v342
    %v344 = vadd.f32 %v343, 1.0
    %v345 = vmul.f32 %v344, %v329
    %vm346 = vweird.f32 %v47
    %v347 = vadd.s32 %v330, 3
    %v348 = vand.u32 %v347, 3
    %vm349 = vcmp.lt.s32.totalorder %v348, 2
    %vm350 = vcmp.eq.s32.totalorder %v348, 0
    %v351 = vxor.u32 %v345, 2147483648
    %v352 = vsel %vm350, %v337, %v351
    %vm353 = vcmp.eq.s32.totalorder %v348, 2
    %v354 = vxor.u32 %v337, 2147483648
    %v355 = vsel %vm353, %v354, %v345
    %v356 = vsel %vm349, %v352, %v355
    %v357 = vsel %vm346, nan, %v356
    %v358 = vstv %s33
    %v359 = vmul.f32 %v358, %v202
    %v360 = vmul.f32 %v358, %v357
    %v361 = vadd.f32 %v35, %v359
    %v362 = vadd.f32 %v36, %v360
    %v363 = vmul.f32 %v43, %v361
    %v364 = vmul.f32 %v44, %v362
    %365 = vst [vmem:[#allocation7] sm:$0xff] %v363
    %366 = vst [vmem:[#allocation7 + $0x8] sm:$0xff] %v364
    // Predicated region
    $region18: #{tpu_custom_call.1} parent=1 // pred_check
      _
    $region19: #{tpu_custom_call.1} parent=1 // pred_check_branch
      %368 = sbr.rel (0) target = $region21
    $region20: #{tpu_custom_call.1} parent=1 // pred_region
      %370 = vsyncadd [#allocation6], 0
      %s371 = sshll.u32 [#allocation7], 4
      %s372 = int_to_ptr.vmem [resolvable:$true] %s371
      %s373 = sshll.u32 %s3, 4
      %s374 = int_to_ptr.hbm [resolvable:$true] %s373
      %379 = dma.vmem_to_hbm [thread:$0]  %s372, 256, %s374, [#allocation6], 128, 128, 8
    $region21: #{tpu_custom_call.1} parent=1 // pred_fallthru
      _
    // Predicated region
    $region22: #{tpu_custom_call.1} parent=1 // pred_check
      _
    $region23: #{tpu_custom_call.1} parent=1 // pred_check_branch
      %381 = sbr.rel (0) target = $region25
    $region24: #{tpu_custom_call.1} parent=1 // pred_region
      %383 = dma.done [#allocation6], 256
    $region25: #{tpu_custom_call.1} parent=1 // pred_fallthru
      _
    %384 = vsyncpa [#allocation5], 1
    %385 = vsyncpa [#allocation6], 1

</llo_original>
